<compile_context>
chip_gen: v7x
topology: tpu7x:2x2x1
jax: 0.10.0
libtpu: 0.0.40
codegen_flags: <defaults>
</compile_context>

<pallas_src>
import jax
import jax.numpy as jnp
from jax.experimental import pallas as pl
from jax.experimental.pallas import tpu as pltpu

EPS = 1e-5  # PyTorch BatchNorm2d default


def _make_kernel(N, H, W, cin, cout):
    HW = H * W
    NHW = N * HW
    inv_m = 1.0 / float(NHW)

    def kernel(x_ref, w1_ref, w2_ref, g1_ref, b1_ref, g2_ref, b2_ref,
               mask_ref, sel_ref, o_ref):
        x = x_ref[...]            # (cin, NHW) f32, lane-dense
        mask = mask_ref[...]      # (9*cin, NHW) f32 in {0,1}; shared by both convs
        w1 = w1_ref[...]          # (cout, 9*cin)   hoisted weight loads
        w2 = w2_ref[...]          # (cout, 9*cout)  (cin == cout)

        def conv3x3(a, w):
            # 3x3 'same' conv on the MXU: per tap, shift the flattened spatial
            # axis with an XLU lane roll; stack the 9 taps along sublanes; zero
            # the out-of-image lanes with ONE precomputed mask multiply (this
            # *is* the zero padding and also kills cross-row / cross-image
            # wrap); contract (cout, 9c) @ (9c, NHW) in a single MXU matmul.
            taps = []
            for dy in (-1, 0, 1):
                for dx in (-1, 0, 1):
                    s = dy * W + dx
                    taps.append(a if s == 0
                                else pltpu.roll(a, (-s) % NHW, axis=1))
            stack = jnp.concatenate(taps, axis=0) * mask       # (9c, NHW)
            return jnp.dot(w, stack, preferred_element_type=jnp.float32)

        def bn_train(c, g_ref, b_ref):
            # Training-mode BN with biased batch variance (two-pass form).
            mu = jnp.sum(c, axis=-1, keepdims=True) * inv_m
            c0 = c - mu
            var = jnp.sum(c0 * c0, axis=-1, keepdims=True) * inv_m
            scale = g_ref[...] * jax.lax.rsqrt(var + EPS)      # (cout, 1)
            return c0 * scale + b_ref[...]

        # conv1 -> bn1 -> relu
        y = jnp.maximum(bn_train(conv3x3(x, w1), g1_ref, b1_ref), 0.0)
        # conv2 -> bn2 -> + identity shortcut -> relu (all in registers)
        y = bn_train(conv3x3(y, w2), g2_ref, b2_ref) + x
        y = jnp.maximum(y, 0.0)

        # 2x2 / stride-2 maxpool: window max via two XLU lane rolls, then the
        # precomputed 0/1 selection matmul compacts the (even-y, even-x)
        # top-left lanes into a lane-dense (cout, NP) slab (unmasked store).
        # Roll-wrap lanes are never selected because H and W are even.
        m = jnp.maximum(y, pltpu.roll(y, NHW - 1, axis=1))
        m = jnp.maximum(m, pltpu.roll(m, NHW - W, axis=1))
        o_ref[...] = jnp.dot(m, sel_ref[...], preferred_element_type=jnp.float32)

    return kernel


def init_params(key, in_planes, planes):
    k1, k2, k3, k4, k5, k6 = jax.random.split(key, 6)
    return dict(
        w1=0.2 * jax.random.normal(k1, (planes, in_planes, 3, 3), jnp.float32),  # OIHW
        w2=0.2 * jax.random.normal(k2, (planes, planes, 3, 3), jnp.float32),
        g1=1.0 + 0.1 * jax.random.normal(k3, (planes,), jnp.float32),
        b1=0.1 * jax.random.normal(k4, (planes,), jnp.float32),
        g2=1.0 + 0.1 * jax.random.normal(k5, (planes,), jnp.float32),
        b2=0.1 * jax.random.normal(k6, (planes,), jnp.float32),
    )


def basic_block_forward(x_nchw, params):
    x_nchw = x_nchw.astype(jnp.float32)
    N, Cin, H, W = x_nchw.shape
    w1 = params["w1"].astype(jnp.float32)                         # OIHW
    w2 = params["w2"].astype(jnp.float32)
    Cout = w1.shape[0]
    assert Cin == Cout, "identity shortcut requires in_planes == planes"
    assert H % 2 == 0 and W % 2 == 0

    HW = H * W
    NHW, H2, W2 = N * HW, H // 2, W // 2
    NP = N * H2 * W2

    # Lane-dense operands: channels on sublanes, flattened (n, y, x) on lanes.
    # (Transposes/reshapes below are layout plumbing outside the kernel.)
    x2d = jnp.transpose(x_nchw, (1, 0, 2, 3)).reshape(Cin, NHW)
    # OIHW -> (Cout, (ky*3 + kx)*Cin + ci), matching the kernel's tap order.
    w1m = jnp.transpose(w1, (0, 2, 3, 1)).reshape(Cout, 9 * Cin)
    w2m = jnp.transpose(w2, (0, 2, 3, 1)).reshape(Cout, 9 * Cout)
    g1 = params["g1"].reshape(Cout, 1).astype(jnp.float32)
    b1 = params["b1"].reshape(Cout, 1).astype(jnp.float32)
    g2 = params["g2"].reshape(Cout, 1).astype(jnp.float32)
    b2 = params["b2"].reshape(Cout, 1).astype(jnp.float32)

    # Compile-time-constant tap-validity mask stack, (9*Cin, NHW):
    # row t*Cin + ci is 1.0 where tap t = (dy+1)*3 + (dx+1) of lane (n, y, x)
    # lands inside the image ('same' zero padding folded into the mask).
    pos = jnp.arange(NHW, dtype=jnp.int32)
    yy = (pos % HW) // W
    xx = pos % W
    rows = []
    for dy in (-1, 0, 1):
        for dx in (-1, 0, 1):
            valid = ((yy + dy >= 0) & (yy + dy < H) &
                     (xx + dx >= 0) & (xx + dx < W)).astype(jnp.float32)
            rows.append(jnp.broadcast_to(valid[None, :], (Cin, NHW)))
    mask_stack = jnp.concatenate(rows, axis=0)                    # (9*Cin, NHW)

    # Compile-time-constant maxpool compaction matrix (NHW, NP): column q is a
    # one-hot selecting the (even-y, even-x) top-left lane of pooled pixel q.
    q = jnp.arange(NP, dtype=jnp.int32)
    n_img = q // (H2 * W2)
    rem = q % (H2 * W2)
    topleft = n_img * HW + (2 * (rem // W2)) * W + 2 * (rem % W2)
    sel = (pos[:, None] == topleft[None, :]).astype(jnp.float32)  # (NHW, NP)

    def spec(shape):
        return pl.BlockSpec(shape, lambda i: (0,) * len(shape))

    out2d = pl.pallas_call(
        _make_kernel(N, H, W, Cin, Cout),
        out_shape=jax.ShapeDtypeStruct((Cout, NP), jnp.float32),
        grid=(1,),
        in_specs=[spec(x2d.shape), spec(w1m.shape), spec(w2m.shape),
                  spec(g1.shape), spec(b1.shape), spec(g2.shape), spec(b2.shape),
                  spec(mask_stack.shape), spec(sel.shape)],
        out_specs=spec((Cout, NP)),
        compiler_params=pltpu.CompilerParams(
            dimension_semantics=("arbitrary",)),
    )(x2d, w1m, w2m, g1, b1, g2, b2, mask_stack, sel)

    out = out2d.reshape(Cout, N, H2, W2)
    return jnp.transpose(out, (1, 0, 2, 3))                       # -> NCHW


def ref_forward(x, params):
    # pure-JAX reference in NCHW (matches PyTorch training-mode semantics)
    def conv(x, w):
        return jax.lax.conv_general_dilated(
            x, w, (1, 1), "SAME",
            dimension_numbers=("NCHW", "OIHW", "NCHW"),
            precision=jax.lax.Precision.HIGHEST)

    def bn(x, g, b):
        mu = jnp.mean(x, axis=(0, 2, 3), keepdims=True)
        var = jnp.mean((x - mu) ** 2, axis=(0, 2, 3), keepdims=True)
        return (x - mu) / jnp.sqrt(var + EPS) * g.reshape(1, -1, 1, 1) + b.reshape(1, -1, 1, 1)

    out = jax.nn.relu(bn(conv(x, params["w1"]), params["g1"], params["b1"]))
    out = bn(conv(out, params["w2"]), params["g2"], params["b2"]) + x
    out = jax.nn.relu(out)
    return jax.lax.reduce_window(out, -jnp.inf, jax.lax.max,
                                 (1, 1, 2, 2), (1, 1, 2, 2), "VALID")


if __name__ == "__main__":
    key = jax.random.PRNGKey(0)
    kx, kp = jax.random.split(key)
    in_planes = planes = 4
    x = jax.random.normal(kx, (2, in_planes, 16, 16), jnp.float32)     # NCHW
    params = init_params(kp, in_planes, planes)

    out = jax.block_until_ready(basic_block_forward(x, params))
    ref = jax.block_until_ready(ref_forward(x, params))

    assert out.shape == (2, planes, 8, 8), out.shape
    assert jnp.allclose(out, ref, atol=1e-2, rtol=1e-2), \
        float(jnp.max(jnp.abs(out - ref)))

    print("KERNEL_OK")
</pallas_src>

<mosaic_0001>
module attributes {stable_mosaic.version = 11 : i64} {
  func.func @kernel(%arg0: i32, %arg1: memref<4x512xf32, #tpu.memory_space<vmem>>, %arg2: memref<4x36xf32, #tpu.memory_space<vmem>>, %arg3: memref<4x36xf32, #tpu.memory_space<vmem>>, %arg4: memref<4x1xf32, #tpu.memory_space<vmem>>, %arg5: memref<4x1xf32, #tpu.memory_space<vmem>>, %arg6: memref<4x1xf32, #tpu.memory_space<vmem>>, %arg7: memref<4x1xf32, #tpu.memory_space<vmem>>, %arg8: memref<36x512xf32, #tpu.memory_space<vmem>>, %arg9: memref<512x128xf32, #tpu.memory_space<vmem>>, %arg10: memref<4x128xf32, #tpu.memory_space<vmem>>) attributes {dimension_semantics = [#tpu.dimension_semantics<arbitrary>], iteration_bounds = array<i64: 1>, scalar_prefetch = 0 : i64, scratch_operands = 0 : i64, tpu.core_type = #tpu.core_type<tc>, window_params = [{pipeline_mode = #tpu.pipeline_mode<synchronous>, transform_indices = @transform_0, window_bounds = array<i64: 4, 512>}, {pipeline_mode = #tpu.pipeline_mode<synchronous>, transform_indices = @transform_1, window_bounds = array<i64: 4, 36>}, {pipeline_mode = #tpu.pipeline_mode<synchronous>, transform_indices = @transform_2, window_bounds = array<i64: 4, 36>}, {pipeline_mode = #tpu.pipeline_mode<synchronous>, transform_indices = @transform_3, window_bounds = array<i64: 4, 1>}, {pipeline_mode = #tpu.pipeline_mode<synchronous>, transform_indices = @transform_4, window_bounds = array<i64: 4, 1>}, {pipeline_mode = #tpu.pipeline_mode<synchronous>, transform_indices = @transform_5, window_bounds = array<i64: 4, 1>}, {pipeline_mode = #tpu.pipeline_mode<synchronous>, transform_indices = @transform_6, window_bounds = array<i64: 4, 1>}, {pipeline_mode = #tpu.pipeline_mode<synchronous>, transform_indices = @transform_7, window_bounds = array<i64: 36, 512>}, {pipeline_mode = #tpu.pipeline_mode<synchronous>, transform_indices = @transform_8, window_bounds = array<i64: 512, 128>}, {pipeline_mode = #tpu.pipeline_mode<synchronous>, transform_indices = @transform_9, window_bounds = array<i64: 4, 128>}]} {
    %c0 = arith.constant 0 : index
    %c0_0 = arith.constant 0 : index
    %0 = vector.load %arg1[%c0, %c0_0] : memref<4x512xf32, #tpu.memory_space<vmem>>, vector<4x512xf32>
    %c0_1 = arith.constant 0 : index
    %c0_2 = arith.constant 0 : index
    %1 = vector.load %arg8[%c0_1, %c0_2] : memref<36x512xf32, #tpu.memory_space<vmem>>, vector<36x512xf32>
    %c0_3 = arith.constant 0 : index
    %c0_4 = arith.constant 0 : index
    %2 = vector.load %arg2[%c0_3, %c0_4] : memref<4x36xf32, #tpu.memory_space<vmem>>, vector<4x36xf32>
    %c0_5 = arith.constant 0 : index
    %c0_6 = arith.constant 0 : index
    %3 = vector.load %arg3[%c0_5, %c0_6] : memref<4x36xf32, #tpu.memory_space<vmem>>, vector<4x36xf32>
    %c17_i32 = arith.constant 17 : i32
    %4 = tpu.dynamic_rotate %0 by %c17_i32 dim 1 : vector<4x512xf32>, i32 -> vector<4x512xf32>
    %c16_i32 = arith.constant 16 : i32
    %5 = tpu.dynamic_rotate %0 by %c16_i32 dim 1 : vector<4x512xf32>, i32 -> vector<4x512xf32>
    %c15_i32 = arith.constant 15 : i32
    %6 = tpu.dynamic_rotate %0 by %c15_i32 dim 1 : vector<4x512xf32>, i32 -> vector<4x512xf32>
    %c1_i32 = arith.constant 1 : i32
    %7 = tpu.dynamic_rotate %0 by %c1_i32 dim 1 : vector<4x512xf32>, i32 -> vector<4x512xf32>
    %c511_i32 = arith.constant 511 : i32
    %8 = tpu.dynamic_rotate %0 by %c511_i32 dim 1 : vector<4x512xf32>, i32 -> vector<4x512xf32>
    %c497_i32 = arith.constant 497 : i32
    %9 = tpu.dynamic_rotate %0 by %c497_i32 dim 1 : vector<4x512xf32>, i32 -> vector<4x512xf32>
    %c496_i32 = arith.constant 496 : i32
    %10 = tpu.dynamic_rotate %0 by %c496_i32 dim 1 : vector<4x512xf32>, i32 -> vector<4x512xf32>
    %c495_i32 = arith.constant 495 : i32
    %11 = tpu.dynamic_rotate %0 by %c495_i32 dim 1 : vector<4x512xf32>, i32 -> vector<4x512xf32>
    %12 = tpu.concatenate %4, %5, %6, %7, %0, %8, %9, %10, %11 in 0 : vector<4x512xf32>, vector<4x512xf32>, vector<4x512xf32>, vector<4x512xf32>, vector<4x512xf32>, vector<4x512xf32>, vector<4x512xf32>, vector<4x512xf32>, vector<4x512xf32> -> vector<36x512xf32>
    %13 = arith.mulf %12, %1 : vector<36x512xf32>
    %cst = arith.constant dense<0.000000e+00> : vector<4x512xf32>
    %14 = tpu.matmul %2, %13, %cst {dimension_numbers = #tpu.dot_dimension_numbers<[1], [0], [0], [1], [0, 0, 1, 1], [], []>} : vector<4x36xf32>, vector<36x512xf32>, vector<4x512xf32> -> vector<4x512xf32>
    %cst_7 = arith.constant dense<0.000000e+00> : vector<4xf32>
    %15 = vector.multi_reduction <add>, %14, %cst_7 [1] : vector<4x512xf32> to vector<4xf32>
    %16 = vector.shape_cast %15 : vector<4xf32> to vector<4x1xf32>
    %cst_8 = arith.constant 0.001953125 : f32
    %17 = vector.broadcast %cst_8 : f32 to vector<4x1xf32>
    %18 = arith.mulf %16, %17 : vector<4x1xf32>
    %19 = vector.broadcast %18 : vector<4x1xf32> to vector<4x512xf32>
    %20 = arith.subf %14, %19 : vector<4x512xf32>
    %21 = arith.mulf %20, %20 : vector<4x512xf32>
    %cst_9 = arith.constant dense<0.000000e+00> : vector<4xf32>
    %22 = vector.multi_reduction <add>, %21, %cst_9 [1] : vector<4x512xf32> to vector<4xf32>
    %23 = vector.shape_cast %22 : vector<4xf32> to vector<4x1xf32>
    %cst_10 = arith.constant 0.001953125 : f32
    %24 = vector.broadcast %cst_10 : f32 to vector<4x1xf32>
    %25 = arith.mulf %23, %24 : vector<4x1xf32>
    %c0_11 = arith.constant 0 : index
    %c0_12 = arith.constant 0 : index
    %26 = vector.load %arg4[%c0_11, %c0_12] : memref<4x1xf32, #tpu.memory_space<vmem>>, vector<4x1xf32>
    %cst_13 = arith.constant 9.99999974E-6 : f32
    %27 = vector.broadcast %cst_13 : f32 to vector<4x1xf32>
    %28 = arith.addf %25, %27 : vector<4x1xf32>
    %29 = math.rsqrt %28 : vector<4x1xf32>
    %30 = arith.mulf %26, %29 : vector<4x1xf32>
    %31 = vector.broadcast %30 : vector<4x1xf32> to vector<4x512xf32>
    %32 = arith.mulf %20, %31 : vector<4x512xf32>
    %c0_14 = arith.constant 0 : index
    %c0_15 = arith.constant 0 : index
    %33 = vector.load %arg5[%c0_14, %c0_15] : memref<4x1xf32, #tpu.memory_space<vmem>>, vector<4x1xf32>
    %34 = vector.broadcast %33 : vector<4x1xf32> to vector<4x512xf32>
    %35 = arith.addf %32, %34 : vector<4x512xf32>
    %cst_16 = arith.constant 0.000000e+00 : f32
    %36 = vector.broadcast %cst_16 : f32 to vector<4x512xf32>
    %37 = arith.maximumf %35, %36 : vector<4x512xf32>
    %c17_i32_17 = arith.constant 17 : i32
    %38 = tpu.dynamic_rotate %37 by %c17_i32_17 dim 1 : vector<4x512xf32>, i32 -> vector<4x512xf32>
    %c16_i32_18 = arith.constant 16 : i32
    %39 = tpu.dynamic_rotate %37 by %c16_i32_18 dim 1 : vector<4x512xf32>, i32 -> vector<4x512xf32>
    %c15_i32_19 = arith.constant 15 : i32
    %40 = tpu.dynamic_rotate %37 by %c15_i32_19 dim 1 : vector<4x512xf32>, i32 -> vector<4x512xf32>
    %c1_i32_20 = arith.constant 1 : i32
    %41 = tpu.dynamic_rotate %37 by %c1_i32_20 dim 1 : vector<4x512xf32>, i32 -> vector<4x512xf32>
    %c511_i32_21 = arith.constant 511 : i32
    %42 = tpu.dynamic_rotate %37 by %c511_i32_21 dim 1 : vector<4x512xf32>, i32 -> vector<4x512xf32>
    %c497_i32_22 = arith.constant 497 : i32
    %43 = tpu.dynamic_rotate %37 by %c497_i32_22 dim 1 : vector<4x512xf32>, i32 -> vector<4x512xf32>
    %c496_i32_23 = arith.constant 496 : i32
    %44 = tpu.dynamic_rotate %37 by %c496_i32_23 dim 1 : vector<4x512xf32>, i32 -> vector<4x512xf32>
    %c495_i32_24 = arith.constant 495 : i32
    %45 = tpu.dynamic_rotate %37 by %c495_i32_24 dim 1 : vector<4x512xf32>, i32 -> vector<4x512xf32>
    %46 = tpu.concatenate %38, %39, %40, %41, %37, %42, %43, %44, %45 in 0 : vector<4x512xf32>, vector<4x512xf32>, vector<4x512xf32>, vector<4x512xf32>, vector<4x512xf32>, vector<4x512xf32>, vector<4x512xf32>, vector<4x512xf32>, vector<4x512xf32> -> vector<36x512xf32>
    %47 = arith.mulf %46, %1 : vector<36x512xf32>
    %cst_25 = arith.constant dense<0.000000e+00> : vector<4x512xf32>
    %48 = tpu.matmul %3, %47, %cst_25 {dimension_numbers = #tpu.dot_dimension_numbers<[1], [0], [0], [1], [0, 0, 1, 1], [], []>} : vector<4x36xf32>, vector<36x512xf32>, vector<4x512xf32> -> vector<4x512xf32>
    %cst_26 = arith.constant dense<0.000000e+00> : vector<4xf32>
    %49 = vector.multi_reduction <add>, %48, %cst_26 [1] : vector<4x512xf32> to vector<4xf32>
    %50 = vector.shape_cast %49 : vector<4xf32> to vector<4x1xf32>
    %cst_27 = arith.constant 0.001953125 : f32
    %51 = vector.broadcast %cst_27 : f32 to vector<4x1xf32>
    %52 = arith.mulf %50, %51 : vector<4x1xf32>
    %53 = vector.broadcast %52 : vector<4x1xf32> to vector<4x512xf32>
    %54 = arith.subf %48, %53 : vector<4x512xf32>
    %55 = arith.mulf %54, %54 : vector<4x512xf32>
    %cst_28 = arith.constant dense<0.000000e+00> : vector<4xf32>
    %56 = vector.multi_reduction <add>, %55, %cst_28 [1] : vector<4x512xf32> to vector<4xf32>
    %57 = vector.shape_cast %56 : vector<4xf32> to vector<4x1xf32>
    %cst_29 = arith.constant 0.001953125 : f32
    %58 = vector.broadcast %cst_29 : f32 to vector<4x1xf32>
    %59 = arith.mulf %57, %58 : vector<4x1xf32>
    %c0_30 = arith.constant 0 : index
    %c0_31 = arith.constant 0 : index
    %60 = vector.load %arg6[%c0_30, %c0_31] : memref<4x1xf32, #tpu.memory_space<vmem>>, vector<4x1xf32>
    %cst_32 = arith.constant 9.99999974E-6 : f32
    %61 = vector.broadcast %cst_32 : f32 to vector<4x1xf32>
    %62 = arith.addf %59, %61 : vector<4x1xf32>
    %63 = math.rsqrt %62 : vector<4x1xf32>
    %64 = arith.mulf %60, %63 : vector<4x1xf32>
    %65 = vector.broadcast %64 : vector<4x1xf32> to vector<4x512xf32>
    %66 = arith.mulf %54, %65 : vector<4x512xf32>
    %c0_33 = arith.constant 0 : index
    %c0_34 = arith.constant 0 : index
    %67 = vector.load %arg7[%c0_33, %c0_34] : memref<4x1xf32, #tpu.memory_space<vmem>>, vector<4x1xf32>
    %68 = vector.broadcast %67 : vector<4x1xf32> to vector<4x512xf32>
    %69 = arith.addf %66, %68 : vector<4x512xf32>
    %70 = arith.addf %69, %0 : vector<4x512xf32>
    %cst_35 = arith.constant 0.000000e+00 : f32
    %71 = vector.broadcast %cst_35 : f32 to vector<4x512xf32>
    %72 = arith.maximumf %70, %71 : vector<4x512xf32>
    %c511_i32_36 = arith.constant 511 : i32
    %73 = tpu.dynamic_rotate %72 by %c511_i32_36 dim 1 : vector<4x512xf32>, i32 -> vector<4x512xf32>
    %74 = arith.maximumf %72, %73 : vector<4x512xf32>
    %c496_i32_37 = arith.constant 496 : i32
    %75 = tpu.dynamic_rotate %74 by %c496_i32_37 dim 1 : vector<4x512xf32>, i32 -> vector<4x512xf32>
    %76 = arith.maximumf %74, %75 : vector<4x512xf32>
    %c0_38 = arith.constant 0 : index
    %c0_39 = arith.constant 0 : index
    %77 = vector.load %arg9[%c0_38, %c0_39] : memref<512x128xf32, #tpu.memory_space<vmem>>, vector<512x128xf32>
    %cst_40 = arith.constant dense<0.000000e+00> : vector<4x128xf32>
    %78 = tpu.matmul %76, %77, %cst_40 {dimension_numbers = #tpu.dot_dimension_numbers<[1], [0], [0], [1], [0, 0, 1, 1], [], []>} : vector<4x512xf32>, vector<512x128xf32>, vector<4x128xf32> -> vector<4x128xf32>
    %c0_41 = arith.constant 0 : index
    %c0_42 = arith.constant 0 : index
    %79 = vector.load %arg10[%c0_41, %c0_42] : memref<4x128xf32, #tpu.memory_space<vmem>>, vector<4x128xf32>
    tpu.vector_store %arg10[%c0_41, %c0_42], %78 {strides = array<i32>} : memref<4x128xf32, #tpu.memory_space<vmem>>, vector<4x128xf32>,
    return
  }
  func.func @transform_0(%arg0: i32) -> (i32, i32) {
    %c0_i32 = arith.constant 0 : i32
    %c0_i32_0 = arith.constant 0 : i32
    %c0_i32_1 = arith.constant 0 : i32
    return %c0_i32, %c0_i32_0 : i32, i32
  }
  func.func @transform_1(%arg0: i32) -> (i32, i32) {
    %c0_i32 = arith.constant 0 : i32
    %c0_i32_0 = arith.constant 0 : i32
    %c0_i32_1 = arith.constant 0 : i32
    return %c0_i32, %c0_i32_0 : i32, i32
  }
  func.func @transform_2(%arg0: i32) -> (i32, i32) {
    %c0_i32 = arith.constant 0 : i32
    %c0_i32_0 = arith.constant 0 : i32
    %c0_i32_1 = arith.constant 0 : i32
    return %c0_i32, %c0_i32_0 : i32, i32
  }
  func.func @transform_3(%arg0: i32) -> (i32, i32) {
    %c0_i32 = arith.constant 0 : i32
    %c0_i32_0 = arith.constant 0 : i32
    %c0_i32_1 = arith.constant 0 : i32
    return %c0_i32, %c0_i32_0 : i32, i32
  }
  func.func @transform_4(%arg0: i32) -> (i32, i32) {
    %c0_i32 = arith.constant 0 : i32
    %c0_i32_0 = arith.constant 0 : i32
    %c0_i32_1 = arith.constant 0 : i32
    return %c0_i32, %c0_i32_0 : i32, i32
  }
  func.func @transform_5(%arg0: i32) -> (i32, i32) {
    %c0_i32 = arith.constant 0 : i32
    %c0_i32_0 = arith.constant 0 : i32
    %c0_i32_1 = arith.constant 0 : i32
    return %c0_i32, %c0_i32_0 : i32, i32
  }
  func.func @transform_6(%arg0: i32) -> (i32, i32) {
    %c0_i32 = arith.constant 0 : i32
    %c0_i32_0 = arith.constant 0 : i32
    %c0_i32_1 = arith.constant 0 : i32
    return %c0_i32, %c0_i32_0 : i32, i32
  }
  func.func @transform_7(%arg0: i32) -> (i32, i32) {
    %c0_i32 = arith.constant 0 : i32
    %c0_i32_0 = arith.constant 0 : i32
    %c0_i32_1 = arith.constant 0 : i32
    return %c0_i32, %c0_i32_0 : i32, i32
  }
  func.func @transform_8(%arg0: i32) -> (i32, i32) {
    %c0_i32 = arith.constant 0 : i32
    %c0_i32_0 = arith.constant 0 : i32
    %c0_i32_1 = arith.constant 0 : i32
    return %c0_i32, %c0_i32_0 : i32, i32
  }
  func.func @transform_9(%arg0: i32) -> (i32, i32) {
    %c0_i32 = arith.constant 0 : i32
    %c0_i32_0 = arith.constant 0 : i32
    %c0_i32_1 = arith.constant 0 : i32
    return %c0_i32, %c0_i32_0 : i32, i32
  }
}

</mosaic_0001>

<llo_original>
// kernel: tpu_custom_call.1
$region0: #{tpu_custom_call.1}
  #allocation0 [shape = 'u32[]', space=smem, size = 0x4, offset = 0x4, fixed_abs, tag = 'smem constant byte address 0x4 - core index']
  #allocation1 [shape = 'u32[144,128]{1,0:T(1,128)}', space=vmem, size = 0x12000, scoped, tag = 'internal scratch']
  %s0 = inlined_call_operand.vmem [shape: f32[4,512], index: 0, kind: input, shape index: {}]
  %s1 = inlined_call_operand.vmem [shape: f32[4,36], index: 1, kind: input, shape index: {}]
  %s2 = inlined_call_operand.vmem [shape: f32[4,36], index: 2, kind: input, shape index: {}]
  %s3 = inlined_call_operand.vmem [shape: f32[4,1], index: 3, kind: input, shape index: {}]
  %s4 = inlined_call_operand.vmem [shape: f32[4,1], index: 4, kind: input, shape index: {}]
  %s5 = inlined_call_operand.vmem [shape: f32[4,1], index: 5, kind: input, shape index: {}]
  %s6 = inlined_call_operand.vmem [shape: f32[4,1], index: 6, kind: input, shape index: {}]
  %s7 = inlined_call_operand.hbm [shape: f32[36,512], index: 7, kind: input, shape index: {}]
  %s8 = inlined_call_operand.hbm [shape: f32[512,128], index: 8, kind: input, shape index: {}]
  %s9 = inlined_call_operand.hbm [shape: f32[4,128], index: 9, kind: output, shape index: {}]
  %s10 = sld [smem:[#allocation0]]
  $region54: #{tpu_custom_call.1} parent=0
    _
  %s12 = ssub.s32 1, %s10
  %s13 = scalar_select 0, %s12, %s10
  $region1: #{tpu_custom_call.1} parent=0
    #allocation2 [shape = 'u8[81920]{0}', space=vmem, size = 0x14000, scoped, tag = 'input window, operand 7, single buffered']
    #allocation3 [shape = 's32[1]{0}', space=sflag, size = 0x4, scoped, tag = 'scoped memory for tpu_custom_call.1']
    #allocation4 [shape = 's32[1]{0}', space=sflag, size = 0x4, scoped, tag = 'scoped memory for tpu_custom_call.1']
    #allocation5 [shape = 'u8[262144]{0}', space=vmem, size = 0x40000, scoped, tag = 'input window, operand 8, single buffered']
    #allocation6 [shape = 's32[1]{0}', space=sflag, size = 0x4, scoped, tag = 'scoped memory for tpu_custom_call.1']
    #allocation7 [shape = 'u8[2048]{0}', space=vmem, size = 0x800, scoped, tag = 'output window, operand 0, single buffered']
    %14 = vsyncpa [#allocation3], 0
    %15 = vsyncpa [#allocation6], 0
    %16 = vsyncpa [#allocation4], 0
    // Predicated region
    $region2: #{tpu_custom_call.1} parent=1 // pred_check
      _
    $region3: #{tpu_custom_call.1} parent=1 // pred_check_branch
      %18 = sbr.rel (0) target = $region5
    $region4: #{tpu_custom_call.1} parent=1 // pred_region
      _
    $region5: #{tpu_custom_call.1} parent=1 // pred_fallthru
      _
    // Predicated region
    $region6: #{tpu_custom_call.1} parent=1 // pred_check
      _
    $region7: #{tpu_custom_call.1} parent=1 // pred_check_branch
      %20 = sbr.rel (0) target = $region9
    $region8: #{tpu_custom_call.1} parent=1 // pred_region
      _
    $region9: #{tpu_custom_call.1} parent=1 // pred_fallthru
      _
    // Predicated region
    $region10: #{tpu_custom_call.1} parent=1 // pred_check
      _
    $region11: #{tpu_custom_call.1} parent=1 // pred_check_branch
      %22 = sbr.rel (0) target = $region13
    $region12: #{tpu_custom_call.1} parent=1 // pred_region
      _
    $region13: #{tpu_custom_call.1} parent=1 // pred_fallthru
      _
    // Predicated region
    $region14: #{tpu_custom_call.1} parent=1 // pred_check
      _
    $region15: #{tpu_custom_call.1} parent=1 // pred_check_branch
      %24 = sbr.rel (0) target = $region17
    $region16: #{tpu_custom_call.1} parent=1 // pred_region
      _
    $region17: #{tpu_custom_call.1} parent=1 // pred_fallthru
      _
    // Predicated region
    $region18: #{tpu_custom_call.1} parent=1 // pred_check
      _
    $region19: #{tpu_custom_call.1} parent=1 // pred_check_branch
      %26 = sbr.rel (0) target = $region21
    $region20: #{tpu_custom_call.1} parent=1 // pred_region
      _
    $region21: #{tpu_custom_call.1} parent=1 // pred_fallthru
      _
    // Predicated region
    $region22: #{tpu_custom_call.1} parent=1 // pred_check
      _
    $region23: #{tpu_custom_call.1} parent=1 // pred_check_branch
      %28 = sbr.rel (0) target = $region25
    $region24: #{tpu_custom_call.1} parent=1 // pred_region
      _
    $region25: #{tpu_custom_call.1} parent=1 // pred_fallthru
      _
    // Predicated region
    $region26: #{tpu_custom_call.1} parent=1 // pred_check
      _
    $region27: #{tpu_custom_call.1} parent=1 // pred_check_branch
      %30 = sbr.rel (0) target = $region29
    $region28: #{tpu_custom_call.1} parent=1 // pred_region
      _
    $region29: #{tpu_custom_call.1} parent=1 // pred_fallthru
      _
    // Predicated region
    $region30: #{tpu_custom_call.1} parent=1 // pred_check
      _
    $region31: #{tpu_custom_call.1} parent=1 // pred_check_branch
      %32 = sbr.rel (0) target = $region33
    $region32: #{tpu_custom_call.1} parent=1 // pred_region
      %s34 = ssub.s32 2560, 2560
      %35 = vsyncadd [#allocation3], %s34
      %s36 = sshll.u32 [#allocation2], 4
      %s37 = int_to_ptr.vmem [resolvable:$true] %s36
      %42 = dma.hbm_to_vmem [thread:$0]  %s7, 2560, %s37, [#allocation3], 512, 512, 32
    $region33: #{tpu_custom_call.1} parent=1 // pred_fallthru
      _
    // Predicated region
    $region34: #{tpu_custom_call.1} parent=1 // pred_check
      _
    $region35: #{tpu_custom_call.1} parent=1 // pred_check_branch
      %44 = sbr.rel (0) target = $region37
    $region36: #{tpu_custom_call.1} parent=1 // pred_region
      %s46 = ssub.s32 8192, 8192
      %47 = vsyncadd [#allocation6], %s46
      %s48 = sshll.u32 [#allocation5], 4
      %s49 = int_to_ptr.vmem [resolvable:$true] %s48
      %54 = dma.hbm_to_vmem [thread:$0]  %s8, 8192, %s49, [#allocation6], 128, 128, 8
    $region37: #{tpu_custom_call.1} parent=1 // pred_fallthru
      _
    // Predicated region
    $region38: #{tpu_custom_call.1} parent=1 // pred_check
      _
    $region39: #{tpu_custom_call.1} parent=1 // pred_check_branch
      %56 = sbr.rel (0) target = $region41
    $region40: #{tpu_custom_call.1} parent=1 // pred_region
      %57 = dma.done [#allocation3], 2560
    $region41: #{tpu_custom_call.1} parent=1 // pred_fallthru
      _
    // Predicated region
    $region42: #{tpu_custom_call.1} parent=1 // pred_check
      _
    $region43: #{tpu_custom_call.1} parent=1 // pred_check_branch
      %59 = sbr.rel (0) target = $region45
    $region44: #{tpu_custom_call.1} parent=1 // pred_region
      %60 = dma.done [#allocation6], 8192
    $region45: #{tpu_custom_call.1} parent=1 // pred_fallthru
      _
    %v61 = vld [vmem:[%s0] sm:$0xff]
    %v62 = vld [vmem:[%s0 + $0x8] sm:$0xff]
    %v63 = vld [vmem:[#allocation2] sm:$0xff]
    %v64 = vld [vmem:[#allocation2 + $0x8] sm:$0xff]
    %v65 = vld [vmem:[#allocation2 + $0x10] sm:$0xff]
    %v66 = vld [vmem:[#allocation2 + $0x18] sm:$0xff]
    %v67 = vld [vmem:[#allocation2 + $0x20] sm:$0xff]
    %v68 = vld [vmem:[#allocation2 + $0x28] sm:$0xff]
    %v69 = vld [vmem:[#allocation2 + $0x30] sm:$0xff]
    %v70 = vld [vmem:[#allocation2 + $0x38] sm:$0xff]
    %v71 = vld [vmem:[#allocation2 + $0x40] sm:$0xff]
    %v72 = vld [vmem:[#allocation2 + $0x48] sm:$0xff]
    %v73 = vld [vmem:[#allocation2 + $0x50] sm:$0xff]
    %v74 = vld [vmem:[#allocation2 + $0x58] sm:$0xff]
    %v75 = vld [vmem:[#allocation2 + $0x60] sm:$0xff]
    %v76 = vld [vmem:[#allocation2 + $0x68] sm:$0xff]
    %v77 = vld [vmem:[#allocation2 + $0x70] sm:$0xff]
    %v78 = vld [vmem:[#allocation2 + $0x78] sm:$0xff]
    %v79 = vld [vmem:[#allocation2 + $0x80] sm:$0xf]
    %v80 = vld [vmem:[#allocation2 + $0x88] sm:$0xf]
    %v81 = vld [vmem:[#allocation2 + $0x90] sm:$0xf]
    %v82 = vld [vmem:[#allocation2 + $0x98] sm:$0xf]
    %v83 = vld [vmem:[%s1] sm:$0xf]
    %v84 = vld [vmem:[%s2] sm:$0xf]
    %v87 = vcombine.high %v61, %v61
    %v88 = vcombine.high %v62, %v62
    %91 = vrot.lane.b32.xlu0 %v61, 17
    %v92 = vpop.permute.xlu0 %91
    %93 = vrot.lane.b32.xlu0 %v87, 17
    %v94 = vpop.permute.xlu0 %93
    %95 = vrot.lane.b32.xlu0 %v62, 17
    %v96 = vpop.permute.xlu0 %95
    %97 = vrot.lane.b32.xlu0 %v88, 17
    %v98 = vpop.permute.xlu0 %97
    %v99 = vlaneseq
    %v100 = vand.u32 %v99, 127
    %vm101 = vcmp.lt.s32.totalorder %v100, 17
    %v102 = vsel %vm101, %v96, %v98
    %v103 = vsel %vm101, %v94, %v96
    %v104 = vsel %vm101, %v92, %v94
    %v105 = vsel %vm101, %v98, %v92
    %106 = vrot.lane.b32.xlu0 %v61, 16
    %v107 = vpop.permute.xlu0 %106
    %108 = vrot.lane.b32.xlu0 %v87, 16
    %v109 = vpop.permute.xlu0 %108
    %110 = vrot.lane.b32.xlu0 %v62, 16
    %v111 = vpop.permute.xlu0 %110
    %112 = vrot.lane.b32.xlu0 %v88, 16
    %v113 = vpop.permute.xlu0 %112
    %vm114 = vcmp.lt.s32.totalorder %v100, 16
    %v115 = vsel %vm114, %v111, %v113
    %v116 = vsel %vm114, %v109, %v111
    %v117 = vsel %vm114, %v107, %v109
    %v118 = vsel %vm114, %v113, %v107
    %119 = vrot.lane.b32.xlu0 %v61, 15
    %v120 = vpop.permute.xlu0 %119
    %121 = vrot.lane.b32.xlu0 %v87, 15
    %v122 = vpop.permute.xlu0 %121
    %123 = vrot.lane.b32.xlu0 %v62, 15
    %v124 = vpop.permute.xlu0 %123
    %125 = vrot.lane.b32.xlu0 %v88, 15
    %v126 = vpop.permute.xlu0 %125
    %vm127 = vcmp.lt.s32.totalorder %v100, 15
    %v128 = vsel %vm127, %v124, %v126
    %v129 = vsel %vm127, %v122, %v124
    %v130 = vsel %vm127, %v120, %v122
    %v131 = vsel %vm127, %v126, %v120
    %132 = vrot.lane.b32.xlu0 %v61, 1
    %v133 = vpop.permute.xlu0 %132
    %134 = vrot.lane.b32.xlu0 %v87, 1
    %v135 = vpop.permute.xlu0 %134
    %136 = vrot.lane.b32.xlu0 %v62, 1
    %v137 = vpop.permute.xlu0 %136
    %138 = vrot.lane.b32.xlu0 %v88, 1
    %v139 = vpop.permute.xlu0 %138
    %vm140 = vcmp.lt.s32.totalorder %v100, 1
    %v141 = vsel %vm140, %v137, %v139
    %v142 = vsel %vm140, %v135, %v137
    %v143 = vsel %vm140, %v133, %v135
    %v144 = vsel %vm140, %v139, %v133
    %145 = vrot.lane.b32.xlu0 %v61, 127
    %v146 = vpop.permute.xlu0 %145
    %147 = vrot.lane.b32.xlu0 %v87, 127
    %v148 = vpop.permute.xlu0 %147
    %149 = vrot.lane.b32.xlu0 %v62, 127
    %v150 = vpop.permute.xlu0 %149
    %151 = vrot.lane.b32.xlu0 %v88, 127
    %v152 = vpop.permute.xlu0 %151
    %vm153 = vcmp.lt.s32.totalorder %v100, 127
    %v154 = vsel %vm153, %v150, %v152
    %v155 = vsel %vm153, %v148, %v150
    %v156 = vsel %vm153, %v146, %v148
    %v157 = vsel %vm153, %v152, %v146
    %158 = vrot.lane.b32.xlu0 %v61, 113
    %v159 = vpop.permute.xlu0 %158
    %160 = vrot.lane.b32.xlu0 %v87, 113
    %v161 = vpop.permute.xlu0 %160
    %162 = vrot.lane.b32.xlu0 %v62, 113
    %v163 = vpop.permute.xlu0 %162
    %164 = vrot.lane.b32.xlu0 %v88, 113
    %v165 = vpop.permute.xlu0 %164
    %vm166 = vcmp.lt.s32.totalorder %v100, 113
    %v167 = vsel %vm166, %v163, %v165
    %v168 = vsel %vm166, %v161, %v163
    %v169 = vsel %vm166, %v159, %v161
    %v170 = vsel %vm166, %v165, %v159
    %171 = vrot.lane.b32.xlu0 %v61, 112
    %v172 = vpop.permute.xlu0 %171
    %173 = vrot.lane.b32.xlu0 %v87, 112
    %v174 = vpop.permute.xlu0 %173
    %175 = vrot.lane.b32.xlu0 %v62, 112
    %v176 = vpop.permute.xlu0 %175
    %177 = vrot.lane.b32.xlu0 %v88, 112
    %v178 = vpop.permute.xlu0 %177
    %vm179 = vcmp.lt.s32.totalorder %v100, 112
    %v180 = vsel %vm179, %v176, %v178
    %v181 = vsel %vm179, %v174, %v176
    %v182 = vsel %vm179, %v172, %v174
    %v183 = vsel %vm179, %v178, %v172
    %184 = vrot.lane.b32.xlu0 %v61, 111
    %v185 = vpop.permute.xlu0 %184
    %186 = vrot.lane.b32.xlu0 %v87, 111
    %v187 = vpop.permute.xlu0 %186
    %188 = vrot.lane.b32.xlu0 %v62, 111
    %v189 = vpop.permute.xlu0 %188
    %190 = vrot.lane.b32.xlu0 %v88, 111
    %v191 = vpop.permute.xlu0 %190
    %vm192 = vcmp.lt.s32.totalorder %v100, 111
    %v193 = vsel %vm192, %v189, %v191
    %v194 = vsel %vm192, %v187, %v189
    %v195 = vsel %vm192, %v185, %v187
    %v196 = vsel %vm192, %v191, %v185
    %v201 = vrot.slane %v118, 4
    %v202 = vrot.slane %v117, 4
    %v203 = vrot.slane %v116, 4
    %v204 = vrot.slane %v115, 4
    %v213 = vrot.slane %v144, 4
    %v214 = vrot.slane %v143, 4
    %v215 = vrot.slane %v142, 4
    %v216 = vrot.slane %v141, 4
    %v225 = vrot.slane %v156, 4
    %v226 = vrot.slane %v155, 4
    %v227 = vrot.slane %v154, 4
    %v228 = vrot.slane %v157, 4
    %v237 = vrot.slane %v182, 4
    %v238 = vrot.slane %v181, 4
    %v239 = vrot.slane %v180, 4
    %v240 = vrot.slane %v183, 4
    %vm245 = vcmask 1043456
    %v246 = vsel %vm245, %v105, %v201
    %v247 = vsel %vm245, %v104, %v202
    %v248 = vsel %vm245, %v103, %v203
    %v249 = vsel %vm245, %v102, %v204
    %v250 = vsel %vm245, %v131, %v213
    %v251 = vsel %vm245, %v130, %v214
    %v252 = vsel %vm245, %v129, %v215
    %v253 = vsel %vm245, %v128, %v216
    %v254 = vsel %vm245, %v61, %v225
    %v255 = vsel %vm245, %v87, %v226
    %v256 = vsel %vm245, %v62, %v227
    %v257 = vsel %vm245, %v88, %v228
    %v258 = vsel %vm245, %v169, %v237
    %v259 = vsel %vm245, %v168, %v238
    %v260 = vsel %vm245, %v167, %v239
    %v261 = vsel %vm245, %v170, %v240
    %v262 = vmul.f32 %v246, %v63
    %v263 = vmul.f32 %v247, %v64
    %v264 = vmul.f32 %v248, %v65
    %v265 = vmul.f32 %v249, %v66
    %v266 = vmul.f32 %v250, %v67
    %v267 = vmul.f32 %v251, %v68
    %v268 = vmul.f32 %v252, %v69
    %v269 = vmul.f32 %v253, %v70
    %v270 = vmul.f32 %v254, %v71
    %v271 = vmul.f32 %v255, %v72
    %v272 = vmul.f32 %v256, %v73
    %v273 = vmul.f32 %v257, %v74
    %v274 = vmul.f32 %v258, %v75
    %v275 = vmul.f32 %v259, %v76
    %v276 = vmul.f32 %v260, %v77
    %v277 = vmul.f32 %v261, %v78
    %v278 = vmul.f32 %v195, %v79
    %v279 = vmul.f32 %v194, %v80
    %v280 = vmul.f32 %v193, %v81
    %v281 = vmul.f32 %v196, %v82
    %vm282 = vcmask 293888
    %v284 = vsel %vm282, %v83, 0
    %v287 = vsel %vm245, %v278, 0
    %v290 = vsel %vm245, %v279, 0
    %v293 = vsel %vm245, %v280, 0
    %v296 = vsel %vm245, %v281, 0
    %298 = vmatprep.subr.mxu0 %v263
    %299 = vmatpush1.msra.mxu0 %v262
    %300 = vmatprep.subr.mxu0 %v267
    %301 = vmatpush1.msra.mxu0 %v266
    %302 = vmatprep.subr.mxu0 %v271
    %303 = vmatpush1.msra.mxu0 %v270
    %304 = vmatprep.subr.mxu0 %v275
    %305 = vmatpush1.msra.mxu0 %v274
    %306 = vmatprep.subr.mxu0 %v290
    %307 = vmatpush1.msra.mxu0 %v287
    %308 = vmatprep.subr.mxu0 0.0
    %309 = vmatpush1.msra.mxu0 0.0
    %310 = vmatprep.subr.mxu0 0.0
    %311 = vmatpush1.msra.mxu0 0.0
    %312 = vmatprep.subr.mxu0 0.0
    %313 = vmatpush1.msra.mxu0 0.0
    %314 = vmatprep.subr.mxu0 0.0
    %315 = vmatpush1.msra.mxu0 0.0
    %316 = vmatprep.subr.mxu0 0.0
    %317 = vmatpush1.msra.mxu0 0.0
    %318 = vmatprep.subr.mxu0 0.0
    %319 = vmatpush1.msra.mxu0 0.0
    %320 = vmatprep.subr.mxu0 0.0
    %321 = vmatpush1.msra.mxu0 0.0
    %322 = vmatprep.subr.mxu0 0.0
    %323 = vmatpush1.msra.mxu0 0.0
    %324 = vmatprep.subr.mxu0 0.0
    %325 = vmatpush1.msra.mxu0 0.0
    %326 = vmatprep.subr.mxu0 0.0
    %327 = vmatpush1.msra.mxu0 0.0
    %328 = vmatprep.subr.mxu0 0.0
    %329 = vmatpush1.msra.mxu0 0.0
    %330 = vmatprep.subr.mxu0 0.0
    %331 = vmatpush1.msra.mxu0 0.0
    %332 = vmatprep.subr.mxu0 0.0
    %333 = vmatpush1.msra.mxu0 0.0
    %334 = vmatprep.subr.mxu0 0.0
    %335 = vmatpush1.msra.mxu0 0.0
    %336 = vmatprep.subr.mxu0 0.0
    %337 = vmatpush1.msra.mxu0 0.0
    %338 = vmatprep.subr.mxu0 0.0
    %339 = vmatpush1.msra.mxu0 0.0
    %340 = vmatprep.subr.mxu0 0.0
    %341 = vmatpush1.msra.mxu0 0.0
    %342 = vmatprep.subr.mxu0 0.0
    %343 = vmatpush1.msra.mxu0 0.0
    %344 = vmatprep.subr.mxu0 0.0
    %345 = vmatpush1.msra.mxu0 0.0
    %346 = vmatprep.subr.mxu0 0.0
    %347 = vmatpush1.msra.mxu0 0.0
    %348 = vmatprep.subr.mxu0 0.0
    %349 = vmatpush1.msra.mxu0 0.0
    %350 = vmatprep.subr.mxu0 0.0
    %351 = vmatpush1.msra.mxu0 0.0
    %352 = vmatprep.subr.mxu0 0.0
    %353 = vmatpush1.msra.mxu0 0.0
    %354 = vmatprep.subr.mxu0 0.0
    %355 = vmatpush1.msra.mxu0 0.0
    %356 = vmatprep.subr.mxu0 0.0
    %357 = vmatpush1.msra.mxu0 0.0
    %358 = vmatprep.subr.mxu0 0.0
    %359 = vmatpush1.msra.mxu0 0.0
    %360 = vmatprep.subr.mxu0 0.0
    %361 = vmatpush1.msra.mxu0 0.0
    %362 = vmatprep.mubr.f32.mxu0 0.0
    %363 = vmatmul.mubr.f32.gmra.mrb[0].mxu0 %v284
    %v364 = vpop.f32.mrb[0].mxu0
    %v365 = vadd.f32 0.0, %v364
    %v366 = vpop.f32.mrb[0].mxu0
    %v367 = vadd.f32 0.0, %v366
    %368 = vdwg.mxu0
    %369 = vmatprep.subr.mxu0 %v265
    %370 = vmatpush1.msra.mxu0 %v264
    %371 = vmatprep.subr.mxu0 %v269
    %372 = vmatpush1.msra.mxu0 %v268
    %373 = vmatprep.subr.mxu0 %v273
    %374 = vmatpush1.msra.mxu0 %v272
    %375 = vmatprep.subr.mxu0 %v277
    %376 = vmatpush1.msra.mxu0 %v276
    %377 = vmatprep.subr.mxu0 %v296
    %378 = vmatpush1.msra.mxu0 %v293
    %379 = vmatprep.subr.mxu0 0.0
    %380 = vmatpush1.msra.mxu0 0.0
    %381 = vmatprep.subr.mxu0 0.0
    %382 = vmatpush1.msra.mxu0 0.0
    %383 = vmatprep.subr.mxu0 0.0
    %384 = vmatpush1.msra.mxu0 0.0
    %385 = vmatprep.subr.mxu0 0.0
    %386 = vmatpush1.msra.mxu0 0.0
    %387 = vmatprep.subr.mxu0 0.0
    %388 = vmatpush1.msra.mxu0 0.0
    %389 = vmatprep.subr.mxu0 0.0
    %390 = vmatpush1.msra.mxu0 0.0
    %391 = vmatprep.subr.mxu0 0.0
    %392 = vmatpush1.msra.mxu0 0.0
    %393 = vmatprep.subr.mxu0 0.0
    %394 = vmatpush1.msra.mxu0 0.0
    %395 = vmatprep.subr.mxu0 0.0
    %396 = vmatpush1.msra.mxu0 0.0
    %397 = vmatprep.subr.mxu0 0.0
    %398 = vmatpush1.msra.mxu0 0.0
    %399 = vmatprep.subr.mxu0 0.0
    %400 = vmatpush1.msra.mxu0 0.0
    %401 = vmatprep.subr.mxu0 0.0
    %402 = vmatpush1.msra.mxu0 0.0
    %403 = vmatprep.subr.mxu0 0.0
    %404 = vmatpush1.msra.mxu0 0.0
    %405 = vmatprep.subr.mxu0 0.0
    %406 = vmatpush1.msra.mxu0 0.0
    %407 = vmatprep.subr.mxu0 0.0
    %408 = vmatpush1.msra.mxu0 0.0
    %409 = vmatprep.subr.mxu0 0.0
    %410 = vmatpush1.msra.mxu0 0.0
    %411 = vmatprep.subr.mxu0 0.0
    %412 = vmatpush1.msra.mxu0 0.0
    %413 = vmatprep.subr.mxu0 0.0
    %414 = vmatpush1.msra.mxu0 0.0
    %415 = vmatprep.subr.mxu0 0.0
    %416 = vmatpush1.msra.mxu0 0.0
    %417 = vmatprep.subr.mxu0 0.0
    %418 = vmatpush1.msra.mxu0 0.0
    %419 = vmatprep.subr.mxu0 0.0
    %420 = vmatpush1.msra.mxu0 0.0
    %421 = vmatprep.subr.mxu0 0.0
    %422 = vmatpush1.msra.mxu0 0.0
    %423 = vmatprep.subr.mxu0 0.0
    %424 = vmatpush1.msra.mxu0 0.0
    %425 = vmatprep.subr.mxu0 0.0
    %426 = vmatpush1.msra.mxu0 0.0
    %427 = vmatprep.subr.mxu0 0.0
    %428 = vmatpush1.msra.mxu0 0.0
    %429 = vmatprep.subr.mxu0 0.0
    %430 = vmatpush1.msra.mxu0 0.0
    %431 = vmatprep.subr.mxu0 0.0
    %432 = vmatpush1.msra.mxu0 0.0
    %433 = vmatprep.mubr.f32.mxu0 0.0
    %434 = vmatmul.mubr.f32.gmra.mrb[0].mxu0 %v284
    %v435 = vpop.f32.mrb[0].mxu0
    %v436 = vadd.f32 0.0, %v435
    %v437 = vpop.f32.mrb[0].mxu0
    %v438 = vadd.f32 0.0, %v437
    %439 = vdwg.mxu0
    %v440 = vsel %vm245, %v365, 0.0
    %v441 = vsel %vm245, %v367, 0.0
    %v442 = vadd.f32 %v440, %v441
    %v443 = vsel %vm245, %v436, 0.0
    %v444 = vadd.f32 %v442, %v443
    %v445 = vsel %vm245, %v438, 0.0
    %v446 = vadd.f32 %v444, %v445
    %447 = vadd.xlane.f32.xlu0 %v446
    %v448 = vpop.xlane.xlu0 %447
    %v449 = vmul.f32 %v448, 0.001953125
    %v450 = vsub.f32 %v365, %v449
    %v451 = vsub.f32 %v367, %v449
    %v452 = vsub.f32 %v436, %v449
    %v453 = vsub.f32 %v438, %v449
    %v454 = vmul.f32 %v450, %v450
    %v455 = vmul.f32 %v451, %v451
    %v456 = vmul.f32 %v452, %v452
    %v457 = vmul.f32 %v453, %v453
    %v458 = vsel %vm245, %v454, 0.0
    %v459 = vsel %vm245, %v455, 0.0
    %v460 = vadd.f32 %v458, %v459
    %v461 = vsel %vm245, %v456, 0.0
    %v462 = vadd.f32 %v460, %v461
    %v463 = vsel %vm245, %v457, 0.0
    %v464 = vadd.f32 %v462, %v463
    %465 = vadd.xlane.f32.xlu0 %v464
    %v466 = vpop.xlane.xlu0 %465
    %v467 = vmul.f32 %v466, 0.001953125
    %v468 = vld [vmem:[%s3] sm:$0xf]
    %v469 = vadd.f32 %v467, 1e-05
    %v470 = vrsqrt.pop %v469
    %v471 = vmul.f32 %v468, %v470
    %473 = vset.pattern.permute.xlu0 0
    %474 = vperm.xlu0 %473, %v471
    %v475 = vpop.permute.xlu0 %474
    %v477 = vmul.f32 %v450, %v475
    %v478 = vmul.f32 %v451, %v475
    %v479 = vmul.f32 %v452, %v475
    %v480 = vmul.f32 %v453, %v475
    %v481 = vld [vmem:[%s4] sm:$0xf]
    %483 = vset.pattern.permute.xlu0 0
    %484 = vperm.xlu0 %483, %v481
    %v485 = vpop.permute.xlu0 %484
    %v487 = vadd.f32 %v477, %v485
    %v488 = vadd.f32 %v478, %v485
    %v489 = vadd.f32 %v479, %v485
    %v490 = vadd.f32 %v480, %v485
    %v491 = vmax.f32 %v487, 0.0
    %v492 = vmax.f32 %v488, 0.0
    %v493 = vmax.f32 %v489, 0.0
    %v494 = vmax.f32 %v490, 0.0
    %495 = vrot.lane.b32.xlu0 %v491, 17
    %v496 = vpop.permute.xlu0 %495
    %497 = vrot.lane.b32.xlu0 %v492, 17
    %v498 = vpop.permute.xlu0 %497
    %499 = vrot.lane.b32.xlu0 %v493, 17
    %v500 = vpop.permute.xlu0 %499
    %501 = vrot.lane.b32.xlu0 %v494, 17
    %v502 = vpop.permute.xlu0 %501
    %v503 = vsel %vm101, %v500, %v502
    %v504 = vsel %vm101, %v498, %v500
    %v505 = vsel %vm101, %v496, %v498
    %v506 = vsel %vm101, %v502, %v496
    %507 = vrot.lane.b32.xlu0 %v491, 16
    %v508 = vpop.permute.xlu0 %507
    %509 = vrot.lane.b32.xlu0 %v492, 16
    %v510 = vpop.permute.xlu0 %509
    %511 = vrot.lane.b32.xlu0 %v493, 16
    %v512 = vpop.permute.xlu0 %511
    %513 = vrot.lane.b32.xlu0 %v494, 16
    %v514 = vpop.permute.xlu0 %513
    %v515 = vsel %vm114, %v512, %v514
    %v516 = vsel %vm114, %v510, %v512
    %v517 = vsel %vm114, %v508, %v510
    %v518 = vsel %vm114, %v514, %v508
    %519 = vrot.lane.b32.xlu0 %v491, 15
    %v520 = vpop.permute.xlu0 %519
    %521 = vrot.lane.b32.xlu0 %v492, 15
    %v522 = vpop.permute.xlu0 %521
    %523 = vrot.lane.b32.xlu0 %v493, 15
    %v524 = vpop.permute.xlu0 %523
    %525 = vrot.lane.b32.xlu0 %v494, 15
    %v526 = vpop.permute.xlu0 %525
    %v527 = vsel %vm127, %v524, %v526
    %v528 = vsel %vm127, %v522, %v524
    %v529 = vsel %vm127, %v520, %v522
    %v530 = vsel %vm127, %v526, %v520
    %531 = vrot.lane.b32.xlu0 %v491, 1
    %v532 = vpop.permute.xlu0 %531
    %533 = vrot.lane.b32.xlu0 %v492, 1
    %v534 = vpop.permute.xlu0 %533
    %535 = vrot.lane.b32.xlu0 %v493, 1
    %v536 = vpop.permute.xlu0 %535
    %537 = vrot.lane.b32.xlu0 %v494, 1
    %v538 = vpop.permute.xlu0 %537
    %v539 = vsel %vm140, %v536, %v538
    %v540 = vsel %vm140, %v534, %v536
    %v541 = vsel %vm140, %v532, %v534
    %v542 = vsel %vm140, %v538, %v532
    %543 = vrot.lane.b32.xlu0 %v491, 127
    %v544 = vpop.permute.xlu0 %543
    %545 = vrot.lane.b32.xlu0 %v492, 127
    %v546 = vpop.permute.xlu0 %545
    %547 = vrot.lane.b32.xlu0 %v493, 127
    %v548 = vpop.permute.xlu0 %547
    %549 = vrot.lane.b32.xlu0 %v494, 127
    %v550 = vpop.permute.xlu0 %549
    %v551 = vsel %vm153, %v548, %v550
    %v552 = vsel %vm153, %v546, %v548
    %v553 = vsel %vm153, %v544, %v546
    %v554 = vsel %vm153, %v550, %v544
    %555 = vrot.lane.b32.xlu0 %v491, 113
    %v556 = vpop.permute.xlu0 %555
    %557 = vrot.lane.b32.xlu0 %v492, 113
    %v558 = vpop.permute.xlu0 %557
    %559 = vrot.lane.b32.xlu0 %v493, 113
    %v560 = vpop.permute.xlu0 %559
    %561 = vrot.lane.b32.xlu0 %v494, 113
    %v562 = vpop.permute.xlu0 %561
    %v563 = vsel %vm166, %v560, %v562
    %v564 = vsel %vm166, %v558, %v560
    %v565 = vsel %vm166, %v556, %v558
    %v566 = vsel %vm166, %v562, %v556
    %567 = vrot.lane.b32.xlu0 %v491, 112
    %v568 = vpop.permute.xlu0 %567
    %569 = vrot.lane.b32.xlu0 %v492, 112
    %v570 = vpop.permute.xlu0 %569
    %571 = vrot.lane.b32.xlu0 %v493, 112
    %v572 = vpop.permute.xlu0 %571
    %573 = vrot.lane.b32.xlu0 %v494, 112
    %v574 = vpop.permute.xlu0 %573
    %v575 = vsel %vm179, %v572, %v574
    %v576 = vsel %vm179, %v570, %v572
    %v577 = vsel %vm179, %v568, %v570
    %v578 = vsel %vm179, %v574, %v568
    %579 = vrot.lane.b32.xlu0 %v491, 111
    %v580 = vpop.permute.xlu0 %579
    %581 = vrot.lane.b32.xlu0 %v492, 111
    %v582 = vpop.permute.xlu0 %581
    %583 = vrot.lane.b32.xlu0 %v493, 111
    %v584 = vpop.permute.xlu0 %583
    %585 = vrot.lane.b32.xlu0 %v494, 111
    %v586 = vpop.permute.xlu0 %585
    %v587 = vsel %vm192, %v584, %v586
    %v588 = vsel %vm192, %v582, %v584
    %v589 = vsel %vm192, %v580, %v582
    %v590 = vsel %vm192, %v586, %v580
    %v595 = vrot.slane %v518, 4
    %v596 = vrot.slane %v517, 4
    %v597 = vrot.slane %v516, 4
    %v598 = vrot.slane %v515, 4
    %v607 = vrot.slane %v542, 4
    %v608 = vrot.slane %v541, 4
    %v609 = vrot.slane %v540, 4
    %v610 = vrot.slane %v539, 4
    %v619 = vrot.slane %v553, 4
    %v620 = vrot.slane %v552, 4
    %v621 = vrot.slane %v551, 4
    %v622 = vrot.slane %v554, 4
    %v631 = vrot.slane %v577, 4
    %v632 = vrot.slane %v576, 4
    %v633 = vrot.slane %v575, 4
    %v634 = vrot.slane %v578, 4
    %v639 = vsel %vm245, %v506, %v595
    %v640 = vsel %vm245, %v505, %v596
    %v641 = vsel %vm245, %v504, %v597
    %v642 = vsel %vm245, %v503, %v598
    %v643 = vsel %vm245, %v530, %v607
    %v644 = vsel %vm245, %v529, %v608
    %v645 = vsel %vm245, %v528, %v609
    %v646 = vsel %vm245, %v527, %v610
    %v647 = vsel %vm245, %v491, %v619
    %v648 = vsel %vm245, %v492, %v620
    %v649 = vsel %vm245, %v493, %v621
    %v650 = vsel %vm245, %v494, %v622
    %v651 = vsel %vm245, %v565, %v631
    %v652 = vsel %vm245, %v564, %v632
    %v653 = vsel %vm245, %v563, %v633
    %v654 = vsel %vm245, %v566, %v634
    %v655 = vmul.f32 %v639, %v63
    %v656 = vmul.f32 %v640, %v64
    %v657 = vmul.f32 %v641, %v65
    %v658 = vmul.f32 %v642, %v66
    %v659 = vmul.f32 %v643, %v67
    %v660 = vmul.f32 %v644, %v68
    %v661 = vmul.f32 %v645, %v69
    %v662 = vmul.f32 %v646, %v70
    %v663 = vmul.f32 %v647, %v71
    %v664 = vmul.f32 %v648, %v72
    %v665 = vmul.f32 %v649, %v73
    %v666 = vmul.f32 %v650, %v74
    %v667 = vmul.f32 %v651, %v75
    %v668 = vmul.f32 %v652, %v76
    %v669 = vmul.f32 %v653, %v77
    %v670 = vmul.f32 %v654, %v78
    %v671 = vmul.f32 %v589, %v79
    %v672 = vmul.f32 %v588, %v80
    %v673 = vmul.f32 %v587, %v81
    %v674 = vmul.f32 %v590, %v82
    %v676 = vsel %vm282, %v84, 0
    %v679 = vsel %vm245, %v671, 0
    %v682 = vsel %vm245, %v672, 0
    %v685 = vsel %vm245, %v673, 0
    %v688 = vsel %vm245, %v674, 0
    %690 = vmatprep.subr.mxu0 %v656
    %691 = vmatpush1.msra.mxu0 %v655
    %692 = vmatprep.subr.mxu0 %v660
    %693 = vmatpush1.msra.mxu0 %v659
    %694 = vmatprep.subr.mxu0 %v664
    %695 = vmatpush1.msra.mxu0 %v663
    %696 = vmatprep.subr.mxu0 %v668
    %697 = vmatpush1.msra.mxu0 %v667
    %698 = vmatprep.subr.mxu0 %v682
    %699 = vmatpush1.msra.mxu0 %v679
    %700 = vmatprep.subr.mxu0 0.0
    %701 = vmatpush1.msra.mxu0 0.0
    %702 = vmatprep.subr.mxu0 0.0
    %703 = vmatpush1.msra.mxu0 0.0
    %704 = vmatprep.subr.mxu0 0.0
    %705 = vmatpush1.msra.mxu0 0.0
    %706 = vmatprep.subr.mxu0 0.0
    %707 = vmatpush1.msra.mxu0 0.0
    %708 = vmatprep.subr.mxu0 0.0
    %709 = vmatpush1.msra.mxu0 0.0
    %710 = vmatprep.subr.mxu0 0.0
    %711 = vmatpush1.msra.mxu0 0.0
    %712 = vmatprep.subr.mxu0 0.0
    %713 = vmatpush1.msra.mxu0 0.0
    %714 = vmatprep.subr.mxu0 0.0
    %715 = vmatpush1.msra.mxu0 0.0
    %716 = vmatprep.subr.mxu0 0.0
    %717 = vmatpush1.msra.mxu0 0.0
    %718 = vmatprep.subr.mxu0 0.0
    %719 = vmatpush1.msra.mxu0 0.0
    %720 = vmatprep.subr.mxu0 0.0
    %721 = vmatpush1.msra.mxu0 0.0
    %722 = vmatprep.subr.mxu0 0.0
    %723 = vmatpush1.msra.mxu0 0.0
    %724 = vmatprep.subr.mxu0 0.0
    %725 = vmatpush1.msra.mxu0 0.0
    %726 = vmatprep.subr.mxu0 0.0
    %727 = vmatpush1.msra.mxu0 0.0
    %728 = vmatprep.subr.mxu0 0.0
    %729 = vmatpush1.msra.mxu0 0.0
    %730 = vmatprep.subr.mxu0 0.0
    %731 = vmatpush1.msra.mxu0 0.0
    %732 = vmatprep.subr.mxu0 0.0
    %733 = vmatpush1.msra.mxu0 0.0
    %734 = vmatprep.subr.mxu0 0.0
    %735 = vmatpush1.msra.mxu0 0.0
    %736 = vmatprep.subr.mxu0 0.0
    %737 = vmatpush1.msra.mxu0 0.0
    %738 = vmatprep.subr.mxu0 0.0
    %739 = vmatpush1.msra.mxu0 0.0
    %740 = vmatprep.subr.mxu0 0.0
    %741 = vmatpush1.msra.mxu0 0.0
    %742 = vmatprep.subr.mxu0 0.0
    %743 = vmatpush1.msra.mxu0 0.0
    %744 = vmatprep.subr.mxu0 0.0
    %745 = vmatpush1.msra.mxu0 0.0
    %746 = vmatprep.subr.mxu0 0.0
    %747 = vmatpush1.msra.mxu0 0.0
    %748 = vmatprep.subr.mxu0 0.0
    %749 = vmatpush1.msra.mxu0 0.0
    %750 = vmatprep.subr.mxu0 0.0
    %751 = vmatpush1.msra.mxu0 0.0
    %752 = vmatprep.subr.mxu0 0.0
    %753 = vmatpush1.msra.mxu0 0.0
    %754 = vmatprep.mubr.f32.mxu0 0.0
    %755 = vmatmul.mubr.f32.gmra.mrb[0].mxu0 %v676
    %v756 = vpop.f32.mrb[0].mxu0
    %v757 = vadd.f32 0.0, %v756
    %v758 = vpop.f32.mrb[0].mxu0
    %v759 = vadd.f32 0.0, %v758
    %760 = vdwg.mxu0
    %761 = vmatprep.subr.mxu0 %v658
    %762 = vmatpush1.msra.mxu0 %v657
    %763 = vmatprep.subr.mxu0 %v662
    %764 = vmatpush1.msra.mxu0 %v661
    %765 = vmatprep.subr.mxu0 %v666
    %766 = vmatpush1.msra.mxu0 %v665
    %767 = vmatprep.subr.mxu0 %v670
    %768 = vmatpush1.msra.mxu0 %v669
    %769 = vmatprep.subr.mxu0 %v688
    %770 = vmatpush1.msra.mxu0 %v685
    %771 = vmatprep.subr.mxu0 0.0
    %772 = vmatpush1.msra.mxu0 0.0
    %773 = vmatprep.subr.mxu0 0.0
    %774 = vmatpush1.msra.mxu0 0.0
    %775 = vmatprep.subr.mxu0 0.0
    %776 = vmatpush1.msra.mxu0 0.0
    %777 = vmatprep.subr.mxu0 0.0
    %778 = vmatpush1.msra.mxu0 0.0
    %779 = vmatprep.subr.mxu0 0.0
    %780 = vmatpush1.msra.mxu0 0.0
    %781 = vmatprep.subr.mxu0 0.0
    %782 = vmatpush1.msra.mxu0 0.0
    %783 = vmatprep.subr.mxu0 0.0
    %784 = vmatpush1.msra.mxu0 0.0
    %785 = vmatprep.subr.mxu0 0.0
    %786 = vmatpush1.msra.mxu0 0.0
    %787 = vmatprep.subr.mxu0 0.0
    %788 = vmatpush1.msra.mxu0 0.0
    %789 = vmatprep.subr.mxu0 0.0
    %790 = vmatpush1.msra.mxu0 0.0
    %791 = vmatprep.subr.mxu0 0.0
    %792 = vmatpush1.msra.mxu0 0.0
    %793 = vmatprep.subr.mxu0 0.0
    %794 = vmatpush1.msra.mxu0 0.0
    %795 = vmatprep.subr.mxu0 0.0
    %796 = vmatpush1.msra.mxu0 0.0
    %797 = vmatprep.subr.mxu0 0.0
    %798 = vmatpush1.msra.mxu0 0.0
    %799 = vmatprep.subr.mxu0 0.0
    %800 = vmatpush1.msra.mxu0 0.0
    %801 = vmatprep.subr.mxu0 0.0
    %802 = vmatpush1.msra.mxu0 0.0
    %803 = vmatprep.subr.mxu0 0.0
    %804 = vmatpush1.msra.mxu0 0.0
    %805 = vmatprep.subr.mxu0 0.0
    %806 = vmatpush1.msra.mxu0 0.0
    %807 = vmatprep.subr.mxu0 0.0
    %808 = vmatpush1.msra.mxu0 0.0
    %809 = vmatprep.subr.mxu0 0.0
    %810 = vmatpush1.msra.mxu0 0.0
    %811 = vmatprep.subr.mxu0 0.0
    %812 = vmatpush1.msra.mxu0 0.0
    %813 = vmatprep.subr.mxu0 0.0
    %814 = vmatpush1.msra.mxu0 0.0
    %815 = vmatprep.subr.mxu0 0.0
    %816 = vmatpush1.msra.mxu0 0.0
    %817 = vmatprep.subr.mxu0 0.0
    %818 = vmatpush1.msra.mxu0 0.0
    %819 = vmatprep.subr.mxu0 0.0
    %820 = vmatpush1.msra.mxu0 0.0
    %821 = vmatprep.subr.mxu0 0.0
    %822 = vmatpush1.msra.mxu0 0.0
    %823 = vmatprep.subr.mxu0 0.0
    %824 = vmatpush1.msra.mxu0 0.0
    %825 = vmatprep.mubr.f32.mxu0 0.0
    %826 = vmatmul.mubr.f32.gmra.mrb[0].mxu0 %v676
    %v827 = vpop.f32.mrb[0].mxu0
    %v828 = vadd.f32 0.0, %v827
    %v829 = vpop.f32.mrb[0].mxu0
    %v830 = vadd.f32 0.0, %v829
    %831 = vdwg.mxu0
    %v832 = vsel %vm245, %v757, 0.0
    %v833 = vsel %vm245, %v759, 0.0
    %v834 = vadd.f32 %v832, %v833
    %v835 = vsel %vm245, %v828, 0.0
    %v836 = vadd.f32 %v834, %v835
    %v837 = vsel %vm245, %v830, 0.0
    %v838 = vadd.f32 %v836, %v837
    %839 = vadd.xlane.f32.xlu0 %v838
    %v840 = vpop.xlane.xlu0 %839
    %v841 = vmul.f32 %v840, 0.001953125
    %v842 = vsub.f32 %v757, %v841
    %v843 = vsub.f32 %v759, %v841
    %v844 = vsub.f32 %v828, %v841
    %v845 = vsub.f32 %v830, %v841
    %v846 = vmul.f32 %v842, %v842
    %v847 = vmul.f32 %v843, %v843
    %v848 = vmul.f32 %v844, %v844
    %v849 = vmul.f32 %v845, %v845
    %v850 = vsel %vm245, %v846, 0.0
    %v851 = vsel %vm245, %v847, 0.0
    %v852 = vadd.f32 %v850, %v851
    %v853 = vsel %vm245, %v848, 0.0
    %v854 = vadd.f32 %v852, %v853
    %v855 = vsel %vm245, %v849, 0.0
    %v856 = vadd.f32 %v854, %v855
    %857 = vadd.xlane.f32.xlu0 %v856
    %v858 = vpop.xlane.xlu0 %857
    %v859 = vmul.f32 %v858, 0.001953125
    %v860 = vld [vmem:[%s5] sm:$0xf]
    %v861 = vadd.f32 %v859, 1e-05
    %v862 = vrsqrt.pop %v861
    %v863 = vmul.f32 %v860, %v862
    %865 = vset.pattern.permute.xlu0 0
    %866 = vperm.xlu0 %865, %v863
    %v867 = vpop.permute.xlu0 %866
    %v869 = vmul.f32 %v842, %v867
    %v870 = vmul.f32 %v843, %v867
    %v871 = vmul.f32 %v844, %v867
    %v872 = vmul.f32 %v845, %v867
    %v873 = vld [vmem:[%s6] sm:$0xf]
    %875 = vset.pattern.permute.xlu0 0
    %876 = vperm.xlu0 %875, %v873
    %v877 = vpop.permute.xlu0 %876
    %v879 = vadd.f32 %v869, %v877
    %v880 = vadd.f32 %v870, %v877
    %v881 = vadd.f32 %v871, %v877
    %v882 = vadd.f32 %v872, %v877
    %v883 = vadd.f32 %v879, %v61
    %v884 = vadd.f32 %v880, %v87
    %v885 = vadd.f32 %v881, %v62
    %v886 = vadd.f32 %v882, %v88
    %v887 = vmax.f32 %v883, 0.0
    %v888 = vmax.f32 %v884, 0.0
    %v889 = vmax.f32 %v885, 0.0
    %v890 = vmax.f32 %v886, 0.0
    %891 = vrot.lane.b32.xlu0 %v887, 127
    %v892 = vpop.permute.xlu0 %891
    %893 = vrot.lane.b32.xlu0 %v888, 127
    %v894 = vpop.permute.xlu0 %893
    %895 = vrot.lane.b32.xlu0 %v889, 127
    %v896 = vpop.permute.xlu0 %895
    %897 = vrot.lane.b32.xlu0 %v890, 127
    %v898 = vpop.permute.xlu0 %897
    %v899 = vsel %vm153, %v896, %v898
    %v900 = vsel %vm153, %v894, %v896
    %v901 = vsel %vm153, %v892, %v894
    %v902 = vsel %vm153, %v898, %v892
    %v903 = vmax.f32 %v887, %v901
    %v904 = vmax.f32 %v888, %v900
    %v905 = vmax.f32 %v889, %v899
    %v906 = vmax.f32 %v890, %v902
    %907 = vrot.lane.b32.xlu0 %v903, 112
    %v908 = vpop.permute.xlu0 %907
    %909 = vrot.lane.b32.xlu0 %v904, 112
    %v910 = vpop.permute.xlu0 %909
    %911 = vrot.lane.b32.xlu0 %v905, 112
    %v912 = vpop.permute.xlu0 %911
    %913 = vrot.lane.b32.xlu0 %v906, 112
    %v914 = vpop.permute.xlu0 %913
    %v915 = vsel %vm179, %v912, %v914
    %v916 = vsel %vm179, %v910, %v912
    %v917 = vsel %vm179, %v908, %v910
    %v918 = vsel %vm179, %v914, %v908
    %v919 = vmax.f32 %v903, %v917
    %v920 = vmax.f32 %v904, %v916
    %v921 = vmax.f32 %v905, %v915
    %v922 = vmax.f32 %v906, %v918
    %v923 = vld [vmem:[#allocation5] sm:$0xff]
    %v924 = vld [vmem:[#allocation5 + $0x8] sm:$0xff]
    %v925 = vld [vmem:[#allocation5 + $0x10] sm:$0xff]
    %v926 = vld [vmem:[#allocation5 + $0x18] sm:$0xff]
    %v927 = vld [vmem:[#allocation5 + $0x20] sm:$0xff]
    %v928 = vld [vmem:[#allocation5 + $0x28] sm:$0xff]
    %v929 = vld [vmem:[#allocation5 + $0x30] sm:$0xff]
    %v930 = vld [vmem:[#allocation5 + $0x38] sm:$0xff]
    %v931 = vld [vmem:[#allocation5 + $0x40] sm:$0xff]
    %v932 = vld [vmem:[#allocation5 + $0x48] sm:$0xff]
    %v933 = vld [vmem:[#allocation5 + $0x50] sm:$0xff]
    %v934 = vld [vmem:[#allocation5 + $0x58] sm:$0xff]
    %v935 = vld [vmem:[#allocation5 + $0x60] sm:$0xff]
    %v936 = vld [vmem:[#allocation5 + $0x68] sm:$0xff]
    %v937 = vld [vmem:[#allocation5 + $0x70] sm:$0xff]
    %v938 = vld [vmem:[#allocation5 + $0x78] sm:$0xff]
    %v939 = vld [vmem:[#allocation5 + $0x80] sm:$0xff]
    %v940 = vld [vmem:[#allocation5 + $0x88] sm:$0xff]
    %v941 = vld [vmem:[#allocation5 + $0x90] sm:$0xff]
    %v942 = vld [vmem:[#allocation5 + $0x98] sm:$0xff]
    %v943 = vld [vmem:[#allocation5 + $0xa0] sm:$0xff]
    %v944 = vld [vmem:[#allocation5 + $0xa8] sm:$0xff]
    %v945 = vld [vmem:[#allocation5 + $0xb0] sm:$0xff]
    %v946 = vld [vmem:[#allocation5 + $0xb8] sm:$0xff]
    %v947 = vld [vmem:[#allocation5 + $0xc0] sm:$0xff]
    %v948 = vld [vmem:[#allocation5 + $0xc8] sm:$0xff]
    %v949 = vld [vmem:[#allocation5 + $0xd0] sm:$0xff]
    %v950 = vld [vmem:[#allocation5 + $0xd8] sm:$0xff]
    %v951 = vld [vmem:[#allocation5 + $0xe0] sm:$0xff]
    %v952 = vld [vmem:[#allocation5 + $0xe8] sm:$0xff]
    %v953 = vld [vmem:[#allocation5 + $0xf0] sm:$0xff]
    %v954 = vld [vmem:[#allocation5 + $0xf8] sm:$0xff]
    %v955 = vld [vmem:[#allocation5 + $0x100] sm:$0xff]
    %v956 = vld [vmem:[#allocation5 + $0x108] sm:$0xff]
    %v957 = vld [vmem:[#allocation5 + $0x110] sm:$0xff]
    %v958 = vld [vmem:[#allocation5 + $0x118] sm:$0xff]
    %v959 = vld [vmem:[#allocation5 + $0x120] sm:$0xff]
    %v960 = vld [vmem:[#allocation5 + $0x128] sm:$0xff]
    %v961 = vld [vmem:[#allocation5 + $0x130] sm:$0xff]
    %v962 = vld [vmem:[#allocation5 + $0x138] sm:$0xff]
    %v963 = vld [vmem:[#allocation5 + $0x140] sm:$0xff]
    %v964 = vld [vmem:[#allocation5 + $0x148] sm:$0xff]
    %v965 = vld [vmem:[#allocation5 + $0x150] sm:$0xff]
    %v966 = vld [vmem:[#allocation5 + $0x158] sm:$0xff]
    %v967 = vld [vmem:[#allocation5 + $0x160] sm:$0xff]
    %v968 = vld [vmem:[#allocation5 + $0x168] sm:$0xff]
    %v969 = vld [vmem:[#allocation5 + $0x170] sm:$0xff]
    %v970 = vld [vmem:[#allocation5 + $0x178] sm:$0xff]
    %v971 = vld [vmem:[#allocation5 + $0x180] sm:$0xff]
    %v972 = vld [vmem:[#allocation5 + $0x188] sm:$0xff]
    %v973 = vld [vmem:[#allocation5 + $0x190] sm:$0xff]
    %v974 = vld [vmem:[#allocation5 + $0x198] sm:$0xff]
    %v975 = vld [vmem:[#allocation5 + $0x1a0] sm:$0xff]
    %v976 = vld [vmem:[#allocation5 + $0x1a8] sm:$0xff]
    %v977 = vld [vmem:[#allocation5 + $0x1b0] sm:$0xff]
    %v978 = vld [vmem:[#allocation5 + $0x1b8] sm:$0xff]
    %v979 = vld [vmem:[#allocation5 + $0x1c0] sm:$0xff]
    %v980 = vld [vmem:[#allocation5 + $0x1c8] sm:$0xff]
    %v981 = vld [vmem:[#allocation5 + $0x1d0] sm:$0xff]
    %v982 = vld [vmem:[#allocation5 + $0x1d8] sm:$0xff]
    %v983 = vld [vmem:[#allocation5 + $0x1e0] sm:$0xff]
    %v984 = vld [vmem:[#allocation5 + $0x1e8] sm:$0xff]
    %v985 = vld [vmem:[#allocation5 + $0x1f0] sm:$0xff]
    %v986 = vld [vmem:[#allocation5 + $0x1f8] sm:$0xff]
    %987 = vmatprep.subr.mxu0 0.0
    %988 = vmatpush1.msra.mxu0 %v923
    %989 = vmatprep.subr.mxu0 0.0
    %990 = vmatpush1.msra.mxu0 %v924
    %991 = vmatprep.subr.mxu0 0.0
    %992 = vmatpush1.msra.mxu0 %v925
    %993 = vmatprep.subr.mxu0 0.0
    %994 = vmatpush1.msra.mxu0 %v926
    %995 = vmatprep.subr.mxu0 0.0
    %996 = vmatpush1.msra.mxu0 %v927
    %997 = vmatprep.subr.mxu0 0.0
    %998 = vmatpush1.msra.mxu0 %v928
    %999 = vmatprep.subr.mxu0 0.0
    %1000 = vmatpush1.msra.mxu0 %v929
    %1001 = vmatprep.subr.mxu0 0.0
    %1002 = vmatpush1.msra.mxu0 %v930
    %1003 = vmatprep.subr.mxu0 0.0
    %1004 = vmatpush1.msra.mxu0 %v931
    %1005 = vmatprep.subr.mxu0 0.0
    %1006 = vmatpush1.msra.mxu0 %v932
    %1007 = vmatprep.subr.mxu0 0.0
    %1008 = vmatpush1.msra.mxu0 %v933
    %1009 = vmatprep.subr.mxu0 0.0
    %1010 = vmatpush1.msra.mxu0 %v934
    %1011 = vmatprep.subr.mxu0 0.0
    %1012 = vmatpush1.msra.mxu0 %v935
    %1013 = vmatprep.subr.mxu0 0.0
    %1014 = vmatpush1.msra.mxu0 %v936
    %1015 = vmatprep.subr.mxu0 0.0
    %1016 = vmatpush1.msra.mxu0 %v937
    %1017 = vmatprep.subr.mxu0 0.0
    %1018 = vmatpush1.msra.mxu0 %v938
    %1019 = vmatprep.subr.mxu0 0.0
    %1020 = vmatpush1.msra.mxu0 %v939
    %1021 = vmatprep.subr.mxu0 0.0
    %1022 = vmatpush1.msra.mxu0 %v940
    %1023 = vmatprep.subr.mxu0 0.0
    %1024 = vmatpush1.msra.mxu0 %v941
    %1025 = vmatprep.subr.mxu0 0.0
    %1026 = vmatpush1.msra.mxu0 %v942
    %1027 = vmatprep.subr.mxu0 0.0
    %1028 = vmatpush1.msra.mxu0 %v943
    %1029 = vmatprep.subr.mxu0 0.0
    %1030 = vmatpush1.msra.mxu0 %v944
    %1031 = vmatprep.subr.mxu0 0.0
    %1032 = vmatpush1.msra.mxu0 %v945
    %1033 = vmatprep.subr.mxu0 0.0
    %1034 = vmatpush1.msra.mxu0 %v946
    %1035 = vmatprep.subr.mxu0 0.0
    %1036 = vmatpush1.msra.mxu0 %v947
    %1037 = vmatprep.subr.mxu0 0.0
    %1038 = vmatpush1.msra.mxu0 %v948
    %1039 = vmatprep.subr.mxu0 0.0
    %1040 = vmatpush1.msra.mxu0 %v949
    %1041 = vmatprep.subr.mxu0 0.0
    %1042 = vmatpush1.msra.mxu0 %v950
    %1043 = vmatprep.subr.mxu0 0.0
    %1044 = vmatpush1.msra.mxu0 %v951
    %1045 = vmatprep.subr.mxu0 0.0
    %1046 = vmatpush1.msra.mxu0 %v952
    %1047 = vmatprep.subr.mxu0 0.0
    %1048 = vmatpush1.msra.mxu0 %v953
    %1049 = vmatprep.subr.mxu0 0.0
    %1050 = vmatpush1.msra.mxu0 %v954
    %1051 = vmatprep.mubr.f32.mxu0 %v920
    %1052 = vmatmul.mubr.f32.gmra.mrb[0].mxu0 %v919
    %v1053 = vpop.f32.mrb[0].mxu0
    %v1054 = vadd.f32 0.0, %v1053
    %v1055 = vpop.f32.mrb[0].mxu0
    %1056 = vdwg.mxu0
    %1057 = vmatprep.subr.mxu0 0.0
    %1058 = vmatpush1.msra.mxu0 %v955
    %1059 = vmatprep.subr.mxu0 0.0
    %1060 = vmatpush1.msra.mxu0 %v956
    %1061 = vmatprep.subr.mxu0 0.0
    %1062 = vmatpush1.msra.mxu0 %v957
    %1063 = vmatprep.subr.mxu0 0.0
    %1064 = vmatpush1.msra.mxu0 %v958
    %1065 = vmatprep.subr.mxu0 0.0
    %1066 = vmatpush1.msra.mxu0 %v959
    %1067 = vmatprep.subr.mxu0 0.0
    %1068 = vmatpush1.msra.mxu0 %v960
    %1069 = vmatprep.subr.mxu0 0.0
    %1070 = vmatpush1.msra.mxu0 %v961
    %1071 = vmatprep.subr.mxu0 0.0
    %1072 = vmatpush1.msra.mxu0 %v962
    %1073 = vmatprep.subr.mxu0 0.0
    %1074 = vmatpush1.msra.mxu0 %v963
    %1075 = vmatprep.subr.mxu0 0.0
    %1076 = vmatpush1.msra.mxu0 %v964
    %1077 = vmatprep.subr.mxu0 0.0
    %1078 = vmatpush1.msra.mxu0 %v965
    %1079 = vmatprep.subr.mxu0 0.0
    %1080 = vmatpush1.msra.mxu0 %v966
    %1081 = vmatprep.subr.mxu0 0.0
    %1082 = vmatpush1.msra.mxu0 %v967
    %1083 = vmatprep.subr.mxu0 0.0
    %1084 = vmatpush1.msra.mxu0 %v968
    %1085 = vmatprep.subr.mxu0 0.0
    %1086 = vmatpush1.msra.mxu0 %v969
    %1087 = vmatprep.subr.mxu0 0.0
    %1088 = vmatpush1.msra.mxu0 %v970
    %1089 = vmatprep.subr.mxu0 0.0
    %1090 = vmatpush1.msra.mxu0 %v971
    %1091 = vmatprep.subr.mxu0 0.0
    %1092 = vmatpush1.msra.mxu0 %v972
    %1093 = vmatprep.subr.mxu0 0.0
    %1094 = vmatpush1.msra.mxu0 %v973
    %1095 = vmatprep.subr.mxu0 0.0
    %1096 = vmatpush1.msra.mxu0 %v974
    %1097 = vmatprep.subr.mxu0 0.0
    %1098 = vmatpush1.msra.mxu0 %v975
    %1099 = vmatprep.subr.mxu0 0.0
    %1100 = vmatpush1.msra.mxu0 %v976
    %1101 = vmatprep.subr.mxu0 0.0
    %1102 = vmatpush1.msra.mxu0 %v977
    %1103 = vmatprep.subr.mxu0 0.0
    %1104 = vmatpush1.msra.mxu0 %v978
    %1105 = vmatprep.subr.mxu0 0.0
    %1106 = vmatpush1.msra.mxu0 %v979
    %1107 = vmatprep.subr.mxu0 0.0
    %1108 = vmatpush1.msra.mxu0 %v980
    %1109 = vmatprep.subr.mxu0 0.0
    %1110 = vmatpush1.msra.mxu0 %v981
    %1111 = vmatprep.subr.mxu0 0.0
    %1112 = vmatpush1.msra.mxu0 %v982
    %1113 = vmatprep.subr.mxu0 0.0
    %1114 = vmatpush1.msra.mxu0 %v983
    %1115 = vmatprep.subr.mxu0 0.0
    %1116 = vmatpush1.msra.mxu0 %v984
    %1117 = vmatprep.subr.mxu0 0.0
    %1118 = vmatpush1.msra.mxu0 %v985
    %1119 = vmatprep.subr.mxu0 0.0
    %1120 = vmatpush1.msra.mxu0 %v986
    %1121 = vmatprep.mubr.f32.mxu0 %v922
    %1122 = vmatmul.mubr.f32.gmra.mrb[0].mxu0 %v921
    %v1123 = vpop.f32.mrb[0].mxu0
    %v1124 = vadd.f32 %v1054, %v1123
    %v1125 = vpop.f32.mrb[0].mxu0
    %1126 = vdwg.mxu0
    %1127 = vst [vmem:[#allocation7] sm:$0xf] %v1124
    // Predicated region
    $region46: #{tpu_custom_call.1} parent=1 // pred_check
      _
    $region47: #{tpu_custom_call.1} parent=1 // pred_check_branch
      %1129 = sbr.rel (0) target = $region49
    $region48: #{tpu_custom_call.1} parent=1 // pred_region
      %s1131 = ssub.s32 64, 64
      %1132 = vsyncadd [#allocation4], %s1131
      %s1134 = sshll.u32 [#allocation7], 4
      %s1135 = int_to_ptr.vmem [resolvable:$true] %s1134
      %1137 = dma.vmem_to_hbm [thread:$0]  %s1135, 64, %s9, [#allocation4]
    $region49: #{tpu_custom_call.1} parent=1 // pred_fallthru
      _
    // Predicated region
    $region50: #{tpu_custom_call.1} parent=1 // pred_check
      _
    $region51: #{tpu_custom_call.1} parent=1 // pred_check_branch
      %1139 = sbr.rel (0) target = $region53
    $region52: #{tpu_custom_call.1} parent=1 // pred_region
      %1140 = dma.done [#allocation4], 64
    $region53: #{tpu_custom_call.1} parent=1 // pred_fallthru
      _
    %1141 = vsyncpa [#allocation3], 1
    %1142 = vsyncpa [#allocation6], 1
    %1143 = vsyncpa [#allocation4], 1

</llo_original>
